<compile_context>
chip_gen: v7x
topology: tpu7x:2x2x1
jax: 0.10.0
libtpu: 0.0.40
codegen_flags: <defaults>
</compile_context>

<pallas_src>
import numpy as np

import jax
import jax.numpy as jnp
from jax.experimental import pallas as pl
from jax.experimental.pallas import tpu as pltpu


def _sam_kernel(x_ref, k_ref, b_ref, o_ref):
    # x_ref: (Nb, C, HW) native dtype VMEM
    # k_ref: (2*HW, HW)  bf16 VMEM (fused conv-as-matmul matrix, constant index)
    # b_ref: (1,)        f32 SMEM
    # o_ref: (Nb, HW)    f32 VMEM (lane-dense store)
    _, C, _ = x_ref.shape

    # Single chunked pass over channels: sum accumulated in f32, max in native
    # dtype.  Chunking bounds live vregs / VMEM-load pressure for large C; for
    # small C this collapses to one full-block load.
    ck = min(C, 64)
    s = None
    m = None
    for c0 in range(0, C, ck):
        cw = min(ck, C - c0)
        xc = x_ref[:, c0:c0 + cw, :]
        sc = jnp.sum(xc, axis=1, dtype=jnp.float32)
        mc = jnp.max(xc, axis=1)
        s = sc if s is None else s + sc
        m = mc if m is None else jnp.maximum(m, mc)
    avg = s * (1.0 / C)                                    # (Nb, HW) f32

    # One fused bf16 MXU matmul: [avg | max] @ K   (contraction dim = 2*HW).
    cat = jnp.concatenate(
        [avg.astype(jnp.bfloat16), m.astype(jnp.bfloat16)], axis=-1)
    conv = jnp.dot(cat, k_ref[...], preferred_element_type=jnp.float32)
    o_ref[...] = jax.nn.sigmoid(conv + b_ref[0])


_KMAT_CACHE = {}


def _conv7x7_as_matmul_matrix(weight, H, W):
    """Fused conv-as-matmul matrix K (2*H*W, H*W) in bf16 such that
         conv7x7_pad3(avg, max) == concat([avg, max], -1) @ K
    (row block 0 <- avg / weight channel 0, row block 1 <- max / channel 1).
    Built on the host with numpy and memoized per weight value."""
    w = np.asarray(jax.device_get(weight), dtype=np.float32).reshape(2, 7, 7)
    key = (w.tobytes(), H, W)
    hit = _KMAT_CACHE.get(key)
    if hit is not None:
        return hit
    dh = np.arange(H)[:, None] - np.arange(H)[None, :] + 3          # (H, H) = hi-ho+3
    dw = np.arange(W)[:, None] - np.arange(W)[None, :] + 3          # (W, W) = wi-wo+3
    valid = ((dh >= 0) & (dh < 7))[:, :, None, None] & \
            ((dw >= 0) & (dw < 7))[None, None, :, :]                # (H, H, W, W)
    dhc = np.clip(dh, 0, 6)
    dwc = np.clip(dw, 0, 6)
    # k4[c, hi, ho, wi, wo] = w[c, hi-ho+3, wi-wo+3]  (0 outside the 7x7 window)
    k4 = w[:, dhc[:, :, None, None], dwc[None, None, :, :]]         # (2, H, H, W, W)
    k4 = np.where(valid, k4, 0.0)
    k4 = np.transpose(k4, (0, 1, 3, 2, 4))                          # (2, hi, wi, ho, wo)
    kmat = jnp.asarray(k4.reshape(2 * H * W, H * W), dtype=jnp.bfloat16)
    _KMAT_CACHE[key] = kmat
    return kmat


def _pick_batch_block(N, C, HW, x_itemsize, k_vmem_bytes,
                      *, max_nb=256, vmem_budget=40 * 2**20):
    """Largest MXU-M batch block fitting a v7x-safe VMEM budget, 8-aligned when
    it tiles N, leaving >=2 grid steps when N allows (megacore)."""
    per_sample = 2 * C * HW * x_itemsize + 2 * HW * 4   # dbl-buffered x rows + f32 out rows
    avail = vmem_budget - k_vmem_bytes - (2 << 20)      # K (dbl-buffered) + headroom
    fit = max(1, avail // per_sample) if avail > per_sample else 1
    nb = min(max_nb, N, fit)
    if N >= 16:
        nb = min(nb, -(-N // 2))                 # >=2 grid steps so both v7x TCs get work
    if nb < N:
        nb = min(N, max(8, (nb // 8) * 8))       # sublane-aligned (nb, HW) output block
    return int(nb)


@jax.jit
def _sam_forward(x, kmat, bias):
    N, C, H, W = x.shape
    HW = H * W
    kmat_bytes = kmat.size * kmat.dtype.itemsize
    nb = _pick_batch_block(N, C, HW, x.dtype.itemsize, 2 * kmat_bytes)
    grid = pl.cdiv(N, nb)

    x_flat = x.reshape(N, C, HW)                         # native dtype, no upcast
    b_flat = bias.reshape(-1).astype(jnp.float32)        # (1,)

    vmem_need = (2 * nb * C * HW * x.dtype.itemsize      # x block (double-buffered)
                 + 2 * nb * HW * 4                       # out block (double-buffered)
                 + 2 * kmat_bytes)                       # K (double-buffered, bf16)
    vmem_limit = int(min(48 * 2**20, max(32 * 2**20, vmem_need + (8 << 20))))

    cost = pl.CostEstimate(
        flops=int(2 * N * (2 * HW) * HW + 3 * N * C * HW),
        transcendentals=int(N * HW),
        bytes_accessed=int(N * C * HW * x.dtype.itemsize + N * HW * 4 + kmat_bytes),
    )

    out_flat = pl.pallas_call(
        _sam_kernel,
        out_shape=jax.ShapeDtypeStruct((N, HW), jnp.float32),
        grid_spec=pltpu.PrefetchScalarGridSpec(
            num_scalar_prefetch=0,
            grid=(grid,),
            in_specs=[
                pl.BlockSpec((nb, C, HW), lambda i: (i, 0, 0)),
                # Constant index_map: pipeline DMAs K exactly once per core.
                pl.BlockSpec((2 * HW, HW), lambda i: (0, 0)),
                pl.BlockSpec(memory_space=pltpu.MemorySpace.SMEM),
            ],
            out_specs=pl.BlockSpec((nb, HW), lambda i: (i, 0)),
        ),
        compiler_params=pltpu.CompilerParams(
            dimension_semantics=("parallel",),
            vmem_limit_bytes=vmem_limit),
        cost_estimate=cost,
    )(x_flat, kmat, b_flat)

    return out_flat.reshape(N, 1, H, W)


def spatial_attention_pallas(x, weight, bias):
    """x: (N, C, H, W); weight: (1, 2, 7, 7); bias: (1,). Returns (N, 1, H, W) f32."""
    _, _, H, W = x.shape
    kmat = _conv7x7_as_matmul_matrix(weight, H, W)   # host-built, memoized per weight
    return _sam_forward(x, kmat, bias)


def spatial_attention_ref(x, weight, bias):
    avg = jnp.mean(x, axis=1, keepdims=True)
    mx = jnp.max(x, axis=1, keepdims=True)
    cat = jnp.concatenate([avg, mx], axis=1)
    out = jax.lax.conv_general_dilated(
        cat, weight, window_strides=(1, 1), padding=((3, 3), (3, 3)),
        dimension_numbers=("NCHW", "OIHW", "NCHW"),
        precision=jax.lax.Precision.HIGHEST)
    return jax.nn.sigmoid(out + bias.reshape(1, -1, 1, 1))


if __name__ == "__main__":
    key = jax.random.PRNGKey(0)
    kx, kw, kb = jax.random.split(key, 3)

    # small shapes: batch=2, channels=4, spatial=16
    N, C, H, W = 2, 4, 16, 16
    x = jax.random.normal(kx, (N, C, H, W), dtype=jnp.float32)

    # deterministic conv params (PyTorch-style uniform init, fan_in = 2*7*7)
    fan_in = 2 * 7 * 7
    bound = 1.0 / (fan_in ** 0.5)
    weight = jax.random.uniform(kw, (1, 2, 7, 7), jnp.float32, -bound, bound)
    bias = jax.random.uniform(kb, (1,), jnp.float32, -bound, bound)

    out = spatial_attention_pallas(x, weight, bias)
    out = jax.block_until_ready(out)

    ref = spatial_attention_ref(x, weight, bias)
    assert out.shape == (N, 1, H, W)
    # Tolerance covers the bf16 MXU matmul (f32 accumulation); any
    # indexing/padding bug would produce errors >> 5e-3.
    err = float(jnp.max(jnp.abs(out - ref)))
    assert err < 5e-3, err

    print("KERNEL_OK")
</pallas_src>

<mosaic_0001>
module attributes {stable_mosaic.version = 11 : i64} {
  func.func @_sam_kernel(%arg0: i32, %arg1: memref<2x4x256xf32, #tpu.memory_space<vmem>>, %arg2: memref<512x256xbf16, #tpu.memory_space<vmem>>, %arg3: memref<1xf32, #tpu.memory_space<smem>>, %arg4: memref<2x256xf32, #tpu.memory_space<vmem>>) attributes {dimension_semantics = [#tpu.dimension_semantics<parallel>], iteration_bounds = array<i64: 1>, scalar_prefetch = 0 : i64, scratch_operands = 0 : i64, tpu.core_type = #tpu.core_type<tc>, window_params = [{transform_indices = @transform_0, window_bounds = array<i64: 2, 4, 256>}, {pipeline_mode = #tpu.pipeline_mode<synchronous>, transform_indices = @transform_1, window_bounds = array<i64: 512, 256>}, {transform_indices = @transform_2, window_bounds = array<i64: 1>}, {transform_indices = @transform_3, window_bounds = array<i64: 2, 256>}]} {
    %c0 = arith.constant 0 : index
    %c0_0 = arith.constant 0 : index
    %c0_1 = arith.constant 0 : index
    %0 = vector.load %arg1[%c0, %c0_0, %c0_1] : memref<2x4x256xf32, #tpu.memory_space<vmem>>, vector<2x4x256xf32>
    %cst = arith.constant dense<0.000000e+00> : vector<2x256xf32>
    %1 = vector.multi_reduction <add>, %0, %cst [1] : vector<2x4x256xf32> to vector<2x256xf32>
    %cst_2 = arith.constant dense<0xFF800000> : vector<2x256xf32>
    %2 = vector.multi_reduction <maximumf>, %0, %cst_2 [1] : vector<2x4x256xf32> to vector<2x256xf32>
    %cst_3 = arith.constant 2.500000e-01 : f32
    %3 = vector.broadcast %cst_3 : f32 to vector<2x256xf32>
    %4 = arith.mulf %1, %3 : vector<2x256xf32>
    %5 = arith.truncf %4 : vector<2x256xf32> to vector<2x256xbf16>
    %6 = arith.truncf %2 : vector<2x256xf32> to vector<2x256xbf16>
    %7 = tpu.concatenate %5, %6 in 1 : vector<2x256xbf16>, vector<2x256xbf16> -> vector<2x512xbf16>
    %c0_4 = arith.constant 0 : index
    %c0_5 = arith.constant 0 : index
    %8 = vector.load %arg2[%c0_4, %c0_5] : memref<512x256xbf16, #tpu.memory_space<vmem>>, vector<512x256xbf16>
    %cst_6 = arith.constant dense<0.000000e+00> : vector<2x256xf32>
    %9 = tpu.matmul %7, %8, %cst_6 {dimension_numbers = #tpu.dot_dimension_numbers<[1], [0], [0], [1], [0, 0, 1, 1], [], []>} : vector<2x512xbf16>, vector<512x256xbf16>, vector<2x256xf32> -> vector<2x256xf32>
    %c0_7 = arith.constant 0 : index
    %10 = memref.load %arg3[%c0_7] : memref<1xf32, #tpu.memory_space<smem>>
    %11 = vector.broadcast %10 : f32 to vector<2x256xf32>
    %12 = arith.addf %9, %11 : vector<2x256xf32>
    %13 = arith.negf %12 : vector<2x256xf32>
    %14 = math.exp %13 : vector<2x256xf32>
    %cst_8 = arith.constant 1.000000e+00 : f32
    %15 = vector.broadcast %cst_8 : f32 to vector<2x256xf32>
    %16 = arith.addf %15, %14 : vector<2x256xf32>
    %17 = arith.divf %15, %16 : vector<2x256xf32>
    %c0_9 = arith.constant 0 : index
    %c0_10 = arith.constant 0 : index
    %18 = vector.load %arg4[%c0_9, %c0_10] : memref<2x256xf32, #tpu.memory_space<vmem>>, vector<2x256xf32>
    tpu.vector_store %arg4[%c0_9, %c0_10], %17 {strides = array<i32>} : memref<2x256xf32, #tpu.memory_space<vmem>>, vector<2x256xf32>,
    return
  }
  func.func @transform_0(%arg0: i32) -> (i32, i32, i32) {
    %c0_i32 = arith.constant 0 : i32
    %c0_i32_0 = arith.constant 0 : i32
    %c0_i32_1 = arith.constant 0 : i32
    return %arg0, %c0_i32, %c0_i32_0 : i32, i32, i32
  }
  func.func @transform_1(%arg0: i32) -> (i32, i32) {
    %c0_i32 = arith.constant 0 : i32
    %c0_i32_0 = arith.constant 0 : i32
    %c0_i32_1 = arith.constant 0 : i32
    return %c0_i32, %c0_i32_0 : i32, i32
  }
  func.func @transform_2(%arg0: i32) -> i32 {
    %c0_i32 = arith.constant 0 : i32
    %c0_i32_0 = arith.constant 0 : i32
    return %c0_i32 : i32
  }
  func.func @transform_3(%arg0: i32) -> (i32, i32) {
    %c0_i32 = arith.constant 0 : i32
    %c0_i32_0 = arith.constant 0 : i32
    return %arg0, %c0_i32 : i32, i32
  }
}

</mosaic_0001>

<llo_original>
// kernel: _sam_forward.1
$region0: #{_sam_forward.1}
  #allocation0 [shape = 'u32[]', space=smem, size = 0x4, offset = 0x4, fixed_abs, tag = 'smem constant byte address 0x4 - core index']
  #allocation1 [shape = 'u32[144,128]{1,0:T(1,128)}', space=vmem, size = 0x12000, scoped, tag = 'internal scratch']
  #allocation2 [shape = 'f32[1]{0:T(128)S(6)}', space=smem, size = 0x200, scoped, tag = 'scoped memory for _sam_forward.1']
  %s0 = inlined_call_operand.vmem [shape: f32[2,4,256], index: 0, kind: input, shape index: {}]
  %s1 = inlined_call_operand.hbm [shape: bf16[512,256], index: 1, kind: input, shape index: {}]
  %s2 = inlined_call_operand.<no memory space> [shape: f32[1], index: 2, kind: input, shape index: {}]
  %s3 = inlined_call_operand.vmem [shape: f32[2,256], index: 3, kind: output, shape index: {}]
  %s4 = sld [smem:[#allocation0]]
  $region26: #{_sam_forward.1} parent=0
    _
  %s6 = ssub.s32 1, %s4
  %s7 = scalar_select 0, %s6, %s4
  %8 = sst [smem:[#allocation2]] %s2
  $region1: #{_sam_forward.1} parent=0
    #allocation3 [shape = 'u8[262144]{0}', space=vmem, size = 0x40000, scoped, tag = 'input window, operand 1, single buffered']
    #allocation4 [shape = 's32[1]{0}', space=sflag, size = 0x4, scoped, tag = 'scoped memory for _sam_forward.1']
    %9 = vsyncpa [#allocation4], 0
    // Predicated region
    $region2: #{_sam_forward.1} parent=1 // pred_check
      _
    $region3: #{_sam_forward.1} parent=1 // pred_check_branch
      %11 = sbr.rel (0) target = $region5
    $region4: #{_sam_forward.1} parent=1 // pred_region
      _
    $region5: #{_sam_forward.1} parent=1 // pred_fallthru
      _
    // Predicated region
    $region6: #{_sam_forward.1} parent=1 // pred_check
      _
    $region7: #{_sam_forward.1} parent=1 // pred_check_branch
      %13 = sbr.rel (0) target = $region9
    $region8: #{_sam_forward.1} parent=1 // pred_region
      %s15 = ssub.s32 8192, 8192
      %16 = vsyncadd [#allocation4], %s15
      %s17 = sshll.u32 [#allocation3], 4
      %s18 = int_to_ptr.vmem [resolvable:$true] %s17
      %23 = dma.hbm_to_vmem [thread:$0]  %s1, 8192, %s18, [#allocation4], 128, 128, 8
    $region9: #{_sam_forward.1} parent=1 // pred_fallthru
      _
    // Predicated region
    $region10: #{_sam_forward.1} parent=1 // pred_check
      _
    $region11: #{_sam_forward.1} parent=1 // pred_check_branch
      %25 = sbr.rel (0) target = $region13
    $region12: #{_sam_forward.1} parent=1 // pred_region
      _
    $region13: #{_sam_forward.1} parent=1 // pred_fallthru
      _
    // Predicated region
    $region14: #{_sam_forward.1} parent=1 // pred_check
      _
    $region15: #{_sam_forward.1} parent=1 // pred_check_branch
      %27 = sbr.rel (0) target = $region17
    $region16: #{_sam_forward.1} parent=1 // pred_region
      %28 = dma.done [#allocation4], 8192
    $region17: #{_sam_forward.1} parent=1 // pred_fallthru
      _
    %v29 = vld [vmem:[%s0] sm:$0xff]
    %v30 = vld [vmem:[%s0 + $0x8] sm:$0xff]
    %v33 = vcombine.high %v29, %v29
    %v34 = vcombine.high %v30, %v30
    %vm37 = vcmask 1043456
    %v38 = vsel %vm37, %v29, 0.0
    %v39 = vrot.slane %v38, 4
    %v40 = vadd.f32 %v38, %v39
    %v41 = vrot.slane %v40, 2
    %v42 = vadd.f32 %v40, %v41
    %v43 = vrot.slane %v42, 1
    %v44 = vadd.f32 %v42, %v43
    %v45 = vsel %vm37, %v33, 0.0
    %v46 = vrot.slane %v45, 4
    %v47 = vadd.f32 %v45, %v46
    %v48 = vrot.slane %v47, 2
    %v49 = vadd.f32 %v47, %v48
    %v50 = vrot.slane %v49, 1
    %v51 = vadd.f32 %v49, %v50
    %v52 = vsel %vm37, %v30, 0.0
    %v53 = vrot.slane %v52, 4
    %v54 = vadd.f32 %v52, %v53
    %v55 = vrot.slane %v54, 2
    %v56 = vadd.f32 %v54, %v55
    %v57 = vrot.slane %v56, 1
    %v58 = vadd.f32 %v56, %v57
    %v59 = vsel %vm37, %v34, 0.0
    %v60 = vrot.slane %v59, 4
    %v61 = vadd.f32 %v59, %v60
    %v62 = vrot.slane %v61, 2
    %v63 = vadd.f32 %v61, %v62
    %v64 = vrot.slane %v63, 1
    %v65 = vadd.f32 %v63, %v64
    %v66 = vsel %vm37, %v29, -inf
    %v67 = vrot.slane %v66, 4
    %v68 = vmax.f32 %v66, %v67
    %v69 = vrot.slane %v68, 2
    %v70 = vmax.f32 %v68, %v69
    %v71 = vrot.slane %v70, 1
    %v72 = vmax.f32 %v70, %v71
    %v73 = vsel %vm37, %v33, -inf
    %v74 = vrot.slane %v73, 4
    %v75 = vmax.f32 %v73, %v74
    %v76 = vrot.slane %v75, 2
    %v77 = vmax.f32 %v75, %v76
    %v78 = vrot.slane %v77, 1
    %v79 = vmax.f32 %v77, %v78
    %v80 = vsel %vm37, %v30, -inf
    %v81 = vrot.slane %v80, 4
    %v82 = vmax.f32 %v80, %v81
    %v83 = vrot.slane %v82, 2
    %v84 = vmax.f32 %v82, %v83
    %v85 = vrot.slane %v84, 1
    %v86 = vmax.f32 %v84, %v85
    %v87 = vsel %vm37, %v34, -inf
    %v88 = vrot.slane %v87, 4
    %v89 = vmax.f32 %v87, %v88
    %v90 = vrot.slane %v89, 2
    %v91 = vmax.f32 %v89, %v90
    %v92 = vrot.slane %v91, 1
    %v93 = vmax.f32 %v91, %v92
    %v94 = vmul.f32 %v44, 0.25
    %v95 = vmul.f32 %v51, 0.25
    %v96 = vmul.f32 %v58, 0.25
    %v97 = vmul.f32 %v65, 0.25
    %v98 = vpack.c.bf16 %v94, %v94
    %v99 = vpack.c.bf16 %v95, %v95
    %v100 = vpack.c.bf16 %v96, %v96
    %v101 = vpack.c.bf16 %v97, %v97
    %v102 = vpack.c.bf16 %v72, %v72
    %v103 = vpack.c.bf16 %v79, %v79
    %v104 = vpack.c.bf16 %v86, %v86
    %v105 = vpack.c.bf16 %v93, %v93
    %v110 = vunpack.c.l.b16 %v98
    %v111 = vunpack.c.l.b16 %v99
    %v112 = vunpack.c.l.b16 %v100
    %v113 = vunpack.c.l.b16 %v101
    %vm114 = vcmask 1041409
    %v115 = vsel %vm114, %v112, %v110
    %v116 = vsel %vm114, %v113, %v111
    %v117 = vpack.c.b16 %v115, %v115
    %v118 = vpack.c.b16 %v116, %v116
    %v125 = vunpack.c.l.b16 %v102
    %v126 = vunpack.c.l.b16 %v103
    %v127 = vunpack.c.l.b16 %v104
    %v128 = vunpack.c.l.b16 %v105
    %v129 = vsel %vm114, %v127, %v125
    %v130 = vsel %vm114, %v128, %v126
    %v131 = vpack.c.b16 %v129, %v129
    %v132 = vpack.c.b16 %v130, %v130
    %v135 = vld [vmem:[#allocation3] sm:$0xff]
    %v136 = vld [vmem:[#allocation3 + $0x8] sm:$0xff]
    %v137 = vld [vmem:[#allocation3 + $0x10] sm:$0xff]
    %v138 = vld [vmem:[#allocation3 + $0x18] sm:$0xff]
    %v139 = vld [vmem:[#allocation3 + $0x20] sm:$0xff]
    %v140 = vld [vmem:[#allocation3 + $0x28] sm:$0xff]
    %v141 = vld [vmem:[#allocation3 + $0x30] sm:$0xff]
    %v142 = vld [vmem:[#allocation3 + $0x38] sm:$0xff]
    %v143 = vld [vmem:[#allocation3 + $0x40] sm:$0xff]
    %v144 = vld [vmem:[#allocation3 + $0x48] sm:$0xff]
    %v145 = vld [vmem:[#allocation3 + $0x50] sm:$0xff]
    %v146 = vld [vmem:[#allocation3 + $0x58] sm:$0xff]
    %v147 = vld [vmem:[#allocation3 + $0x60] sm:$0xff]
    %v148 = vld [vmem:[#allocation3 + $0x68] sm:$0xff]
    %v149 = vld [vmem:[#allocation3 + $0x70] sm:$0xff]
    %v150 = vld [vmem:[#allocation3 + $0x78] sm:$0xff]
    %v151 = vld [vmem:[#allocation3 + $0x80] sm:$0xff]
    %v152 = vld [vmem:[#allocation3 + $0x88] sm:$0xff]
    %v153 = vld [vmem:[#allocation3 + $0x90] sm:$0xff]
    %v154 = vld [vmem:[#allocation3 + $0x98] sm:$0xff]
    %v155 = vld [vmem:[#allocation3 + $0xa0] sm:$0xff]
    %v156 = vld [vmem:[#allocation3 + $0xa8] sm:$0xff]
    %v157 = vld [vmem:[#allocation3 + $0xb0] sm:$0xff]
    %v158 = vld [vmem:[#allocation3 + $0xb8] sm:$0xff]
    %v159 = vld [vmem:[#allocation3 + $0xc0] sm:$0xff]
    %v160 = vld [vmem:[#allocation3 + $0xc8] sm:$0xff]
    %v161 = vld [vmem:[#allocation3 + $0xd0] sm:$0xff]
    %v162 = vld [vmem:[#allocation3 + $0xd8] sm:$0xff]
    %v163 = vld [vmem:[#allocation3 + $0xe0] sm:$0xff]
    %v164 = vld [vmem:[#allocation3 + $0xe8] sm:$0xff]
    %v165 = vld [vmem:[#allocation3 + $0xf0] sm:$0xff]
    %v166 = vld [vmem:[#allocation3 + $0xf8] sm:$0xff]
    %v167 = vld [vmem:[#allocation3 + $0x100] sm:$0xff]
    %v168 = vld [vmem:[#allocation3 + $0x108] sm:$0xff]
    %v169 = vld [vmem:[#allocation3 + $0x110] sm:$0xff]
    %v170 = vld [vmem:[#allocation3 + $0x118] sm:$0xff]
    %v171 = vld [vmem:[#allocation3 + $0x120] sm:$0xff]
    %v172 = vld [vmem:[#allocation3 + $0x128] sm:$0xff]
    %v173 = vld [vmem:[#allocation3 + $0x130] sm:$0xff]
    %v174 = vld [vmem:[#allocation3 + $0x138] sm:$0xff]
    %v175 = vld [vmem:[#allocation3 + $0x140] sm:$0xff]
    %v176 = vld [vmem:[#allocation3 + $0x148] sm:$0xff]
    %v177 = vld [vmem:[#allocation3 + $0x150] sm:$0xff]
    %v178 = vld [vmem:[#allocation3 + $0x158] sm:$0xff]
    %v179 = vld [vmem:[#allocation3 + $0x160] sm:$0xff]
    %v180 = vld [vmem:[#allocation3 + $0x168] sm:$0xff]
    %v181 = vld [vmem:[#allocation3 + $0x170] sm:$0xff]
    %v182 = vld [vmem:[#allocation3 + $0x178] sm:$0xff]
    %v183 = vld [vmem:[#allocation3 + $0x180] sm:$0xff]
    %v184 = vld [vmem:[#allocation3 + $0x188] sm:$0xff]
    %v185 = vld [vmem:[#allocation3 + $0x190] sm:$0xff]
    %v186 = vld [vmem:[#allocation3 + $0x198] sm:$0xff]
    %v187 = vld [vmem:[#allocation3 + $0x1a0] sm:$0xff]
    %v188 = vld [vmem:[#allocation3 + $0x1a8] sm:$0xff]
    %v189 = vld [vmem:[#allocation3 + $0x1b0] sm:$0xff]
    %v190 = vld [vmem:[#allocation3 + $0x1b8] sm:$0xff]
    %v191 = vld [vmem:[#allocation3 + $0x1c0] sm:$0xff]
    %v192 = vld [vmem:[#allocation3 + $0x1c8] sm:$0xff]
    %v193 = vld [vmem:[#allocation3 + $0x1d0] sm:$0xff]
    %v194 = vld [vmem:[#allocation3 + $0x1d8] sm:$0xff]
    %v195 = vld [vmem:[#allocation3 + $0x1e0] sm:$0xff]
    %v196 = vld [vmem:[#allocation3 + $0x1e8] sm:$0xff]
    %v197 = vld [vmem:[#allocation3 + $0x1f0] sm:$0xff]
    %v198 = vld [vmem:[#allocation3 + $0x1f8] sm:$0xff]
    %s199 = sld [smem:[#allocation2]]
    %v200 = vstv %s199
    %v265 = vunpack.c.l.b16 %v135
    %v266 = vunpack.c.h.b16 %v135
    %v267 = vunpack.c.l.b16 %v136
    %v268 = vunpack.c.h.b16 %v136
    %v269 = vunpack.c.l.b16 %v137
    %v270 = vunpack.c.h.b16 %v137
    %v271 = vunpack.c.l.b16 %v138
    %v272 = vunpack.c.h.b16 %v138
    %v273 = vunpack.c.l.b16 %v139
    %v274 = vunpack.c.h.b16 %v139
    %v275 = vunpack.c.l.b16 %v140
    %v276 = vunpack.c.h.b16 %v140
    %v277 = vunpack.c.l.b16 %v141
    %v278 = vunpack.c.h.b16 %v141
    %v279 = vunpack.c.l.b16 %v142
    %v280 = vunpack.c.h.b16 %v142
    %v281 = vunpack.c.l.b16 %v143
    %v282 = vunpack.c.h.b16 %v143
    %v283 = vunpack.c.l.b16 %v144
    %v284 = vunpack.c.h.b16 %v144
    %v285 = vunpack.c.l.b16 %v145
    %v286 = vunpack.c.h.b16 %v145
    %v287 = vunpack.c.l.b16 %v146
    %v288 = vunpack.c.h.b16 %v146
    %v289 = vunpack.c.l.b16 %v147
    %v290 = vunpack.c.h.b16 %v147
    %v291 = vunpack.c.l.b16 %v148
    %v292 = vunpack.c.h.b16 %v148
    %v293 = vunpack.c.l.b16 %v149
    %v294 = vunpack.c.h.b16 %v149
    %v295 = vunpack.c.l.b16 %v150
    %v296 = vunpack.c.h.b16 %v150
    %v297 = vunpack.c.l.b16 %v151
    %v298 = vunpack.c.h.b16 %v151
    %v299 = vunpack.c.l.b16 %v152
    %v300 = vunpack.c.h.b16 %v152
    %v301 = vunpack.c.l.b16 %v153
    %v302 = vunpack.c.h.b16 %v153
    %v303 = vunpack.c.l.b16 %v154
    %v304 = vunpack.c.h.b16 %v154
    %v305 = vunpack.c.l.b16 %v155
    %v306 = vunpack.c.h.b16 %v155
    %v307 = vunpack.c.l.b16 %v156
    %v308 = vunpack.c.h.b16 %v156
    %v309 = vunpack.c.l.b16 %v157
    %v310 = vunpack.c.h.b16 %v157
    %v311 = vunpack.c.l.b16 %v158
    %v312 = vunpack.c.h.b16 %v158
    %v313 = vunpack.c.l.b16 %v159
    %v314 = vunpack.c.h.b16 %v159
    %v315 = vunpack.c.l.b16 %v160
    %v316 = vunpack.c.h.b16 %v160
    %v317 = vunpack.c.l.b16 %v161
    %v318 = vunpack.c.h.b16 %v161
    %v319 = vunpack.c.l.b16 %v162
    %v320 = vunpack.c.h.b16 %v162
    %v321 = vunpack.c.l.b16 %v163
    %v322 = vunpack.c.h.b16 %v163
    %v323 = vunpack.c.l.b16 %v164
    %v324 = vunpack.c.h.b16 %v164
    %v325 = vunpack.c.l.b16 %v165
    %v326 = vunpack.c.h.b16 %v165
    %v327 = vunpack.c.l.b16 %v166
    %v328 = vunpack.c.h.b16 %v166
    %v329 = vunpack.c.l.b16 %v167
    %v330 = vunpack.c.h.b16 %v167
    %v331 = vunpack.c.l.b16 %v168
    %v332 = vunpack.c.h.b16 %v168
    %v333 = vunpack.c.l.b16 %v169
    %v334 = vunpack.c.h.b16 %v169
    %v335 = vunpack.c.l.b16 %v170
    %v336 = vunpack.c.h.b16 %v170
    %v337 = vunpack.c.l.b16 %v171
    %v338 = vunpack.c.h.b16 %v171
    %v339 = vunpack.c.l.b16 %v172
    %v340 = vunpack.c.h.b16 %v172
    %v341 = vunpack.c.l.b16 %v173
    %v342 = vunpack.c.h.b16 %v173
    %v343 = vunpack.c.l.b16 %v174
    %v344 = vunpack.c.h.b16 %v174
    %v345 = vunpack.c.l.b16 %v175
    %v346 = vunpack.c.h.b16 %v175
    %v347 = vunpack.c.l.b16 %v176
    %v348 = vunpack.c.h.b16 %v176
    %v349 = vunpack.c.l.b16 %v177
    %v350 = vunpack.c.h.b16 %v177
    %v351 = vunpack.c.l.b16 %v178
    %v352 = vunpack.c.h.b16 %v178
    %v353 = vunpack.c.l.b16 %v179
    %v354 = vunpack.c.h.b16 %v179
    %v355 = vunpack.c.l.b16 %v180
    %v356 = vunpack.c.h.b16 %v180
    %v357 = vunpack.c.l.b16 %v181
    %v358 = vunpack.c.h.b16 %v181
    %v359 = vunpack.c.l.b16 %v182
    %v360 = vunpack.c.h.b16 %v182
    %v361 = vunpack.c.l.b16 %v183
    %v362 = vunpack.c.h.b16 %v183
    %v363 = vunpack.c.l.b16 %v184
    %v364 = vunpack.c.h.b16 %v184
    %v365 = vunpack.c.l.b16 %v185
    %v366 = vunpack.c.h.b16 %v185
    %v367 = vunpack.c.l.b16 %v186
    %v368 = vunpack.c.h.b16 %v186
    %v369 = vunpack.c.l.b16 %v187
    %v370 = vunpack.c.h.b16 %v187
    %v371 = vunpack.c.l.b16 %v188
    %v372 = vunpack.c.h.b16 %v188
    %v373 = vunpack.c.l.b16 %v189
    %v374 = vunpack.c.h.b16 %v189
    %v375 = vunpack.c.l.b16 %v190
    %v376 = vunpack.c.h.b16 %v190
    %v377 = vunpack.c.l.b16 %v191
    %v378 = vunpack.c.h.b16 %v191
    %v379 = vunpack.c.l.b16 %v192
    %v380 = vunpack.c.h.b16 %v192
    %v381 = vunpack.c.l.b16 %v193
    %v382 = vunpack.c.h.b16 %v193
    %v383 = vunpack.c.l.b16 %v194
    %v384 = vunpack.c.h.b16 %v194
    %v385 = vunpack.c.l.b16 %v195
    %v386 = vunpack.c.h.b16 %v195
    %v387 = vunpack.c.l.b16 %v196
    %v388 = vunpack.c.h.b16 %v196
    %v389 = vunpack.c.l.b16 %v197
    %v390 = vunpack.c.h.b16 %v197
    %v391 = vunpack.c.l.b16 %v198
    %v392 = vunpack.c.h.b16 %v198
    %v393 = vpack.c.b16 %v267, %v265
    %v394 = vpack.c.b16 %v268, %v266
    %v395 = vpack.c.b16 %v271, %v269
    %v396 = vpack.c.b16 %v272, %v270
    %v397 = vpack.c.b16 %v275, %v273
    %v398 = vpack.c.b16 %v276, %v274
    %v399 = vpack.c.b16 %v279, %v277
    %v400 = vpack.c.b16 %v280, %v278
    %v401 = vpack.c.b16 %v283, %v281
    %v402 = vpack.c.b16 %v284, %v282
    %v403 = vpack.c.b16 %v287, %v285
    %v404 = vpack.c.b16 %v288, %v286
    %v405 = vpack.c.b16 %v291, %v289
    %v406 = vpack.c.b16 %v292, %v290
    %v407 = vpack.c.b16 %v295, %v293
    %v408 = vpack.c.b16 %v296, %v294
    %v409 = vpack.c.b16 %v299, %v297
    %v410 = vpack.c.b16 %v300, %v298
    %v411 = vpack.c.b16 %v303, %v301
    %v412 = vpack.c.b16 %v304, %v302
    %v413 = vpack.c.b16 %v307, %v305
    %v414 = vpack.c.b16 %v308, %v306
    %v415 = vpack.c.b16 %v311, %v309
    %v416 = vpack.c.b16 %v312, %v310
    %v417 = vpack.c.b16 %v315, %v313
    %v418 = vpack.c.b16 %v316, %v314
    %v419 = vpack.c.b16 %v319, %v317
    %v420 = vpack.c.b16 %v320, %v318
    %v421 = vpack.c.b16 %v323, %v321
    %v422 = vpack.c.b16 %v324, %v322
    %v423 = vpack.c.b16 %v327, %v325
    %v424 = vpack.c.b16 %v328, %v326
    %v425 = vpack.c.b16 %v331, %v329
    %v426 = vpack.c.b16 %v332, %v330
    %v427 = vpack.c.b16 %v335, %v333
    %v428 = vpack.c.b16 %v336, %v334
    %v429 = vpack.c.b16 %v339, %v337
    %v430 = vpack.c.b16 %v340, %v338
    %v431 = vpack.c.b16 %v343, %v341
    %v432 = vpack.c.b16 %v344, %v342
    %v433 = vpack.c.b16 %v347, %v345
    %v434 = vpack.c.b16 %v348, %v346
    %v435 = vpack.c.b16 %v351, %v349
    %v436 = vpack.c.b16 %v352, %v350
    %v437 = vpack.c.b16 %v355, %v353
    %v438 = vpack.c.b16 %v356, %v354
    %v439 = vpack.c.b16 %v359, %v357
    %v440 = vpack.c.b16 %v360, %v358
    %v441 = vpack.c.b16 %v363, %v361
    %v442 = vpack.c.b16 %v364, %v362
    %v443 = vpack.c.b16 %v367, %v365
    %v444 = vpack.c.b16 %v368, %v366
    %v445 = vpack.c.b16 %v371, %v369
    %v446 = vpack.c.b16 %v372, %v370
    %v447 = vpack.c.b16 %v375, %v373
    %v448 = vpack.c.b16 %v376, %v374
    %v449 = vpack.c.b16 %v379, %v377
    %v450 = vpack.c.b16 %v380, %v378
    %v451 = vpack.c.b16 %v383, %v381
    %v452 = vpack.c.b16 %v384, %v382
    %v453 = vpack.c.b16 %v387, %v385
    %v454 = vpack.c.b16 %v388, %v386
    %v455 = vpack.c.b16 %v391, %v389
    %v456 = vpack.c.b16 %v392, %v390
    %521 = vmatprep.subr.bf16.mxu0 %v394
    %522 = vmatpush1.bf16.msra.mxu0 %v393
    %523 = vmatprep.subr.bf16.mxu0 %v396
    %524 = vmatpush1.bf16.msra.mxu0 %v395
    %525 = vmatprep.subr.bf16.mxu0 %v398
    %526 = vmatpush1.bf16.msra.mxu0 %v397
    %527 = vmatprep.subr.bf16.mxu0 %v400
    %528 = vmatpush1.bf16.msra.mxu0 %v399
    %529 = vmatprep.subr.bf16.mxu0 %v402
    %530 = vmatpush1.bf16.msra.mxu0 %v401
    %531 = vmatprep.subr.bf16.mxu0 %v404
    %532 = vmatpush1.bf16.msra.mxu0 %v403
    %533 = vmatprep.subr.bf16.mxu0 %v406
    %534 = vmatpush1.bf16.msra.mxu0 %v405
    %535 = vmatprep.subr.bf16.mxu0 %v408
    %536 = vmatpush1.bf16.msra.mxu0 %v407
    %537 = vmatprep.subr.bf16.mxu0 %v410
    %538 = vmatpush1.bf16.msra.mxu0 %v409
    %539 = vmatprep.subr.bf16.mxu0 %v412
    %540 = vmatpush1.bf16.msra.mxu0 %v411
    %541 = vmatprep.subr.bf16.mxu0 %v414
    %542 = vmatpush1.bf16.msra.mxu0 %v413
    %543 = vmatprep.subr.bf16.mxu0 %v416
    %544 = vmatpush1.bf16.msra.mxu0 %v415
    %545 = vmatprep.subr.bf16.mxu0 %v418
    %546 = vmatpush1.bf16.msra.mxu0 %v417
    %547 = vmatprep.subr.bf16.mxu0 %v420
    %548 = vmatpush1.bf16.msra.mxu0 %v419
    %549 = vmatprep.subr.bf16.mxu0 %v422
    %550 = vmatpush1.bf16.msra.mxu0 %v421
    %551 = vmatprep.subr.bf16.mxu0 %v424
    %552 = vmatpush1.bf16.msra.mxu0 %v423
    %553 = vmatprep.mubr.bf16.mxu0 %v118
    %554 = vmatmul.mubr.bf16.gmra.mrb[0].mxu0 %v117
    %v555 = vpop.f32.mrb[0].mxu0
    %v556 = vadd.f32 %v200, %v555
    %v557 = vpop.f32.mrb[0].mxu0
    %v558 = vadd.f32 %v200, %v557
    %v559 = vpop.f32.mrb[0].mxu0
    %v560 = vpop.f32.mrb[0].mxu0
    %561 = vdwg.mxu0
    %562 = vmatprep.subr.bf16.mxu0 %v426
    %563 = vmatpush1.bf16.msra.mxu0 %v425
    %564 = vmatprep.subr.bf16.mxu0 %v428
    %565 = vmatpush1.bf16.msra.mxu0 %v427
    %566 = vmatprep.subr.bf16.mxu0 %v430
    %567 = vmatpush1.bf16.msra.mxu0 %v429
    %568 = vmatprep.subr.bf16.mxu0 %v432
    %569 = vmatpush1.bf16.msra.mxu0 %v431
    %570 = vmatprep.subr.bf16.mxu0 %v434
    %571 = vmatpush1.bf16.msra.mxu0 %v433
    %572 = vmatprep.subr.bf16.mxu0 %v436
    %573 = vmatpush1.bf16.msra.mxu0 %v435
    %574 = vmatprep.subr.bf16.mxu0 %v438
    %575 = vmatpush1.bf16.msra.mxu0 %v437
    %576 = vmatprep.subr.bf16.mxu0 %v440
    %577 = vmatpush1.bf16.msra.mxu0 %v439
    %578 = vmatprep.subr.bf16.mxu0 %v442
    %579 = vmatpush1.bf16.msra.mxu0 %v441
    %580 = vmatprep.subr.bf16.mxu0 %v444
    %581 = vmatpush1.bf16.msra.mxu0 %v443
    %582 = vmatprep.subr.bf16.mxu0 %v446
    %583 = vmatpush1.bf16.msra.mxu0 %v445
    %584 = vmatprep.subr.bf16.mxu0 %v448
    %585 = vmatpush1.bf16.msra.mxu0 %v447
    %586 = vmatprep.subr.bf16.mxu0 %v450
    %587 = vmatpush1.bf16.msra.mxu0 %v449
    %588 = vmatprep.subr.bf16.mxu0 %v452
    %589 = vmatpush1.bf16.msra.mxu0 %v451
    %590 = vmatprep.subr.bf16.mxu0 %v454
    %591 = vmatpush1.bf16.msra.mxu0 %v453
    %592 = vmatprep.subr.bf16.mxu0 %v456
    %593 = vmatpush1.bf16.msra.mxu0 %v455
    %594 = vmatprep.mubr.bf16.mxu0 %v132
    %595 = vmatmul.mubr.bf16.gmra.mrb[0].mxu0 %v131
    %v596 = vpop.f32.mrb[0].mxu0
    %v597 = vadd.f32 %v556, %v596
    %v598 = vpop.f32.mrb[0].mxu0
    %v599 = vadd.f32 %v558, %v598
    %v600 = vpop.f32.mrb[0].mxu0
    %v601 = vpop.f32.mrb[0].mxu0
    %602 = vdwg.mxu0
    %v603 = vxor.u32 %v597, 2147483648
    %v604 = vxor.u32 %v599, 2147483648
    %v605 = vmul.f32 %v603, 1.442695
    %v606 = vpow.pop %v605
    %v607 = vmul.f32 %v604, 1.442695
    %v608 = vpow.pop %v607
    %v609 = vadd.f32 %v606, 1.0
    %v610 = vadd.f32 %v608, 1.0
    %v611 = vrcp.pop %v609
    %v612 = vmul.f32 1.0, %v611
    %v613 = vrcp.pop %v610
    %v614 = vmul.f32 1.0, %v613
    %v617 = vcombine.low %v612, %v614
    %v619 = vunpack.c.l.s4 1983009808
    %v620 = vunpack.c.0.s8 %v619
    %v621 = vlaneseq
    %v622 = vshrl.u32 %v621, 7
    %v623 = vsub.s32 %v620, %v622
    %v624 = vrot.slane %v617, %v623
    %626 = vst [vmem:[%s3] sm:$0xf] %v624
    // Predicated region
    $region18: #{_sam_forward.1} parent=1 // pred_check
      _
    $region19: #{_sam_forward.1} parent=1 // pred_check_branch
      %628 = sbr.rel (0) target = $region21
    $region20: #{_sam_forward.1} parent=1 // pred_region
      _
    $region21: #{_sam_forward.1} parent=1 // pred_fallthru
      _
    // Predicated region
    $region22: #{_sam_forward.1} parent=1 // pred_check
      _
    $region23: #{_sam_forward.1} parent=1 // pred_check_branch
      %630 = sbr.rel (0) target = $region25
    $region24: #{_sam_forward.1} parent=1 // pred_region
      _
    $region25: #{_sam_forward.1} parent=1 // pred_fallthru
      _
    %631 = vsyncpa [#allocation4], 1

</llo_original>
